<compile_context>
chip_gen: v7x
topology: tpu7x:2x2x1
jax: 0.10.0
libtpu: 0.0.40
codegen_flags: <defaults>
</compile_context>

<pallas_src>
import functools

import jax
import jax.numpy as jnp
from jax.experimental import pallas as pl
from jax.experimental.pallas import tpu as pltpu


def _round_up(x, m):
    return ((x + m - 1) // m) * m


def _pad2d(x, rows, cols):
    r, c = x.shape
    if r == rows and c == cols:
        return x
    return jnp.pad(x, ((0, rows - r), (0, cols - c)))


def _vmem_cap_bytes():
    """Generation-aware VMEM cap (leave headroom for Mosaic internal scratch)."""
    cap = None
    try:
        info = pltpu.get_tpu_info()
        cap = getattr(info, "vmem_capacity_bytes", None)
    except Exception:
        cap = None
    if not cap:
        cap = 64 << 20  # conservative: v7x physical VMEM per TensorCore
    return max(16 << 20, int(cap) - (12 << 20))


def _ce_rowloss_kernel(feat_ref, protoT_ref, labels_ref, loss_ref, *,
                       inv_temp, n_valid, c_valid, c_pad, block_n, mask_rows):
    # Fold temperature into the feature operand (stays in operand dtype, so
    # bf16 inputs keep the fast MXU path; 1/temperature is a trace-time const).
    feat = feat_ref[...] * inv_temp                                # [TN, Dp]

    # Canonical [M,K] @ [K,N] MXU matmul with f32 accumulation.
    sim = jax.lax.dot_general(
        feat, protoT_ref[...],
        dimension_numbers=(((1,), (0,)), ((), ())),
        preferred_element_type=jnp.float32,
    )                                                              # [TN, Cp] f32

    class_ids = jax.lax.broadcasted_iota(jnp.int32, sim.shape, 1)  # [TN, Cp]

    # Padded proto columns are exactly 0 (zero-padded prototypes), so the raw
    # row max is a finite shift with exp(shifted) <= 1 everywhere -> no masked
    # copy of sim needed for numerical stability.
    m = jnp.max(sim, axis=-1, keepdims=True)                       # [TN, 1]
    shifted = sim - m                                              # [TN, Cp]
    e = jnp.exp(shifted)
    if c_valid != c_pad:                                           # static
        e = jnp.where(class_ids < c_valid, e, 0.0)
    denom = jnp.sum(e, axis=-1, keepdims=True)                     # [TN, 1]

    # Target logit via one-hot select on the shifted tile (labels < c_valid,
    # so padded classes can never be picked). The shift m cancels in the loss.
    picked = jnp.sum(jnp.where(class_ids == labels_ref[...], shifted, 0.0),
                     axis=-1, keepdims=True)                       # [TN, 1]

    loss = jnp.log(denom) - picked                                 # [TN, 1]
    if mask_rows:                                                  # static
        row_ids = (pl.program_id(0) * block_n
                   + jax.lax.broadcasted_iota(jnp.int32, (block_n, 1), 0))
        loss = jnp.where(row_ids < n_valid, loss, 0.0)
    loss_ref[...] = loss


def contrastive_proto_feature_loss(feature, proto, labels, temperature=0.5,
                                   block_n=256, compute_dtype=None):
    """feature: [N, D], proto: [C, D], labels: [N] int  ->  scalar f32 loss."""
    n, d = feature.shape
    c, d2 = proto.shape
    assert d == d2, "feature and proto must share the feature dim"

    if compute_dtype is not None:
        # bf16 operands: native MXU rate on v6e/v7x, half the DMA/VMEM bytes.
        # Accumulation stays f32 in-kernel. Slight numeric drift vs f32.
        feature = feature.astype(compute_dtype)
        proto = proto.astype(compute_dtype)

    # Batch tile: multiple of 8; prefer >= 2 grid steps so the "parallel"
    # batch axis can shard across both TensorCores on v7x.
    block_n = max(8, min(int(block_n), _round_up(n, 8)))
    block_n = _round_up(block_n, 8)
    if n >= 16 and _round_up(n, block_n) // block_n < 2:
        block_n = _round_up((n + 1) // 2, 8)
    n_pad = _round_up(n, block_n)
    c_pad = _round_up(c, 128)
    d_pad = _round_up(d, 128)
    grid_n = n_pad // block_n

    feature_p = _pad2d(feature, n_pad, d_pad)
    # One-time HBM transpose -> canonical [K, N] MXU feed, classes on lanes.
    protoT_p = _pad2d(jnp.transpose(proto), d_pad, c_pad)
    labels_p = jnp.pad(labels.astype(jnp.int32).reshape(n, 1),
                       ((0, n_pad - n), (0, 0)))

    kernel = functools.partial(
        _ce_rowloss_kernel,
        inv_temp=1.0 / float(temperature),
        n_valid=n, c_valid=c, c_pad=c_pad, block_n=block_n,
        mask_rows=(n_pad != n),
    )

    # VMEM budget: single-buffered proto + double-buffered feature/labels/out
    # + ~4 live f32 [block_n, c_pad] tiles in the elementwise chain.
    itemsize = jnp.dtype(feature_p.dtype).itemsize
    est = (c_pad * d_pad * itemsize                  # proto.T, 1 buffer
           + 2 * block_n * d_pad * itemsize          # feature, 2 buffers
           + 2 * block_n * (4 + 4)                   # labels + out, 2 buffers
           + 4 * block_n * c_pad * 4                 # sim/shifted/e/select chain
           + (1 << 20))
    vmem_limit = int(min(_vmem_cap_bytes(), max(32 << 20, 2 * est)))

    cost = pl.CostEstimate(
        flops=2 * n_pad * c_pad * d_pad,
        transcendentals=n_pad * c_pad,
        bytes_accessed=(n_pad * d_pad * itemsize + d_pad * c_pad * itemsize
                        + n_pad * 4 + n_pad * 4),
    )

    def build(proto_spec):
        return pl.pallas_call(
            kernel,
            out_shape=jax.ShapeDtypeStruct((n_pad, 1), jnp.float32),
            grid=(grid_n,),
            in_specs=[
                pl.BlockSpec((block_n, d_pad), lambda i: (i, 0)),   # feature
                proto_spec,                                         # proto.T
                pl.BlockSpec((block_n, 1), lambda i: (i, 0)),       # labels
            ],
            out_specs=pl.BlockSpec((block_n, 1), lambda i: (i, 0)),
            compiler_params=pltpu.CompilerParams(
                dimension_semantics=("parallel",),
                vmem_limit_bytes=vmem_limit,
            ),
            cost_estimate=cost,
        )

    try:
        # Constant index_map -> fetched once; a single buffer frees one full
        # c_pad*d_pad slab of VMEM (the largest consumer).
        proto_spec = pl.BlockSpec((d_pad, c_pad), lambda i: (0, 0),
                                  pipeline_mode=pl.Buffered(1))
        row_losses = build(proto_spec)(feature_p, protoT_p, labels_p)
    except Exception:
        # Stricter Pallas builds: fall back to the default double buffer.
        proto_spec = pl.BlockSpec((d_pad, c_pad), lambda i: (0, 0))
        row_losses = build(proto_spec)(feature_p, protoT_p, labels_p)

    # Mean over the *true* batch size (padded rows were zeroed in-kernel).
    return jnp.sum(row_losses) / n


def _reference(feature, proto, labels, temperature=0.5):
    sim = jnp.matmul(feature, proto.T) / temperature
    logz = jax.scipy.special.logsumexp(sim, axis=-1)
    picked = jnp.take_along_axis(sim, labels[:, None], axis=-1)[:, 0]
    return jnp.mean(logz - picked)


if __name__ == "__main__":
    key = jax.random.PRNGKey(0)
    k1, k2, k3, k4, k5, k6 = jax.random.split(key, 6)

    # Config 1: tiny shapes matching the module's typical use (pads C and D).
    N1, D1, C1 = 8, 32, 16
    f1 = jax.random.normal(k1, (N1, D1), dtype=jnp.float32)
    p1 = jax.random.normal(k2, (C1, D1), dtype=jnp.float32)
    y1 = jax.random.randint(k3, (N1,), 0, C1, dtype=jnp.int32)
    out1 = jax.block_until_ready(
        contrastive_proto_feature_loss(f1, p1, y1, temperature=0.5))
    ref1 = _reference(f1, p1, y1, temperature=0.5)
    assert jnp.allclose(out1, ref1, rtol=1e-5, atol=1e-5), (out1, ref1)

    # Config 2: odd shapes -> exercises class padding, batch-row masking and a
    # multi-step "parallel" grid (2 steps of 16 rows).
    N2, D2, C2 = 24, 100, 130
    f2 = jax.random.normal(k4, (N2, D2), dtype=jnp.float32)
    p2 = jax.random.normal(k5, (C2, D2), dtype=jnp.float32)
    y2 = jax.random.randint(k6, (N2,), 0, C2, dtype=jnp.int32)
    out2 = jax.block_until_ready(
        contrastive_proto_feature_loss(f2, p2, y2, temperature=0.5))
    ref2 = _reference(f2, p2, y2, temperature=0.5)
    assert jnp.allclose(out2, ref2, rtol=1e-4, atol=1e-4), (out2, ref2)

    # Config 1 again with bf16 operands (f32 accumulation): looser tolerance.
    out1_bf16 = jax.block_until_ready(
        contrastive_proto_feature_loss(f1, p1, y1, temperature=0.5,
                                       compute_dtype=jnp.bfloat16))
    assert jnp.allclose(out1_bf16, ref1, rtol=0.03, atol=0.2), (out1_bf16, ref1)

    print("KERNEL_OK")
</pallas_src>

<mosaic_0001>
module attributes {stable_mosaic.version = 11 : i64} {
  func.func @_ce_rowloss_kernel(%arg0: i32, %arg1: memref<8x128xf32, #tpu.memory_space<vmem>>, %arg2: memref<128x128xf32, #tpu.memory_space<vmem>>, %arg3: memref<8x1xi32, #tpu.memory_space<vmem>>, %arg4: memref<8x1xf32, #tpu.memory_space<vmem>>) attributes {dimension_semantics = [#tpu.dimension_semantics<parallel>], iteration_bounds = array<i64: 1>, scalar_prefetch = 0 : i64, scratch_operands = 0 : i64, tpu.core_type = #tpu.core_type<tc>, window_params = [{transform_indices = @transform_0, window_bounds = array<i64: 8, 128>}, {pipeline_mode = #tpu.pipeline_mode<synchronous>, transform_indices = @transform_1, window_bounds = array<i64: 128, 128>}, {transform_indices = @transform_2, window_bounds = array<i64: 8, 1>}, {transform_indices = @transform_3, window_bounds = array<i64: 8, 1>}]} {
    %c0 = arith.constant 0 : index
    %c0_0 = arith.constant 0 : index
    %0 = vector.load %arg1[%c0, %c0_0] : memref<8x128xf32, #tpu.memory_space<vmem>>, vector<8x128xf32>
    %cst = arith.constant 2.000000e+00 : f32
    %1 = vector.broadcast %cst : f32 to vector<8x128xf32>
    %2 = arith.mulf %0, %1 : vector<8x128xf32>
    %c0_1 = arith.constant 0 : index
    %c0_2 = arith.constant 0 : index
    %3 = vector.load %arg2[%c0_1, %c0_2] : memref<128x128xf32, #tpu.memory_space<vmem>>, vector<128x128xf32>
    %cst_3 = arith.constant dense<0.000000e+00> : vector<8x128xf32>
    %4 = tpu.matmul %2, %3, %cst_3 {dimension_numbers = #tpu.dot_dimension_numbers<[1], [0], [0], [1], [0, 0, 1, 1], [], []>} : vector<8x128xf32>, vector<128x128xf32>, vector<8x128xf32> -> vector<8x128xf32>
    %5 = tpu.iota {dimensions = array<i32: 1>} : vector<8x128xi32>
    %cst_4 = arith.constant dense<0xFF800000> : vector<8xf32>
    %6 = vector.multi_reduction <maximumf>, %4, %cst_4 [1] : vector<8x128xf32> to vector<8xf32>
    %7 = vector.shape_cast %6 : vector<8xf32> to vector<8x1xf32>
    %8 = vector.broadcast %7 : vector<8x1xf32> to vector<8x128xf32>
    %9 = arith.subf %4, %8 : vector<8x128xf32>
    %10 = math.exp %9 : vector<8x128xf32>
    %c16_i32 = arith.constant 16 : i32
    %11 = vector.broadcast %c16_i32 : i32 to vector<8x128xi32>
    %12 = arith.cmpi slt, %5, %11 : vector<8x128xi32>
    %cst_5 = arith.constant 0.000000e+00 : f32
    %13 = vector.broadcast %cst_5 : f32 to vector<8x128xf32>
    %14 = arith.select %12, %10, %13 : vector<8x128xi1>, vector<8x128xf32>
    %cst_6 = arith.constant dense<0.000000e+00> : vector<8xf32>
    %15 = vector.multi_reduction <add>, %14, %cst_6 [1] : vector<8x128xf32> to vector<8xf32>
    %16 = vector.shape_cast %15 : vector<8xf32> to vector<8x1xf32>
    %c0_7 = arith.constant 0 : index
    %c0_8 = arith.constant 0 : index
    %17 = vector.load %arg3[%c0_7, %c0_8] : memref<8x1xi32, #tpu.memory_space<vmem>>, vector<8x1xi32>
    %18 = vector.broadcast %17 : vector<8x1xi32> to vector<8x128xi32>
    %19 = arith.cmpi eq, %5, %18 : vector<8x128xi32>
    %cst_9 = arith.constant 0.000000e+00 : f32
    %20 = vector.broadcast %cst_9 : f32 to vector<8x128xf32>
    %21 = arith.select %19, %9, %20 : vector<8x128xi1>, vector<8x128xf32>
    %cst_10 = arith.constant dense<0.000000e+00> : vector<8xf32>
    %22 = vector.multi_reduction <add>, %21, %cst_10 [1] : vector<8x128xf32> to vector<8xf32>
    %23 = vector.shape_cast %22 : vector<8xf32> to vector<8x1xf32>
    %24 = math.log %16 : vector<8x1xf32>
    %25 = arith.subf %24, %23 : vector<8x1xf32>
    %c0_11 = arith.constant 0 : index
    %c0_12 = arith.constant 0 : index
    %26 = vector.load %arg4[%c0_11, %c0_12] : memref<8x1xf32, #tpu.memory_space<vmem>>, vector<8x1xf32>
    tpu.vector_store %arg4[%c0_11, %c0_12], %25 {strides = array<i32>} : memref<8x1xf32, #tpu.memory_space<vmem>>, vector<8x1xf32>,
    return
  }
  func.func @transform_0(%arg0: i32) -> (i32, i32) {
    %c0_i32 = arith.constant 0 : i32
    %c0_i32_0 = arith.constant 0 : i32
    return %arg0, %c0_i32 : i32, i32
  }
  func.func @transform_1(%arg0: i32) -> (i32, i32) {
    %c0_i32 = arith.constant 0 : i32
    %c0_i32_0 = arith.constant 0 : i32
    %c0_i32_1 = arith.constant 0 : i32
    return %c0_i32, %c0_i32_0 : i32, i32
  }
  func.func @transform_2(%arg0: i32) -> (i32, i32) {
    %c0_i32 = arith.constant 0 : i32
    %c0_i32_0 = arith.constant 0 : i32
    return %arg0, %c0_i32 : i32, i32
  }
  func.func @transform_3(%arg0: i32) -> (i32, i32) {
    %c0_i32 = arith.constant 0 : i32
    %c0_i32_0 = arith.constant 0 : i32
    return %arg0, %c0_i32 : i32, i32
  }
}

module attributes {stable_mosaic.version = 11 : i64} {
  func.func @_ce_rowloss_kernel(%arg0: i32, %arg1: memref<8x128xf32, #tpu.memory_space<vmem>>, %arg2: memref<128x128xf32, #tpu.memory_space<vmem>>, %arg3: memref<8x1xi32, #tpu.memory_space<vmem>>, %arg4: memref<8x1xf32, #tpu.memory_space<vmem>>) attributes {dimension_semantics = [#tpu.dimension_semantics<parallel>], iteration_bounds = array<i64: 1>, scalar_prefetch = 0 : i64, scratch_operands = 0 : i64, tpu.core_type = #tpu.core_type<tc>, window_params = [{transform_indices = @transform_0, window_bounds = array<i64: 8, 128>}, {pipeline_mode = #tpu.pipeline_mode<synchronous>, transform_indices = @transform_1, window_bounds = array<i64: 128, 128>}, {transform_indices = @transform_2, window_bounds = array<i64: 8, 1>}, {transform_indices = @transform_3, window_bounds = array<i64: 8, 1>}]} {
    %c0 = arith.constant 0 : index
    %c0_0 = arith.constant 0 : index
    %0 = vector.load %arg1[%c0, %c0_0] : memref<8x128xf32, #tpu.memory_space<vmem>>, vector<8x128xf32>
    %cst = arith.constant 2.000000e+00 : f32
    %1 = vector.broadcast %cst : f32 to vector<8x128xf32>
    %2 = arith.mulf %0, %1 : vector<8x128xf32>
    %c0_1 = arith.constant 0 : index
    %c0_2 = arith.constant 0 : index
    %3 = vector.load %arg2[%c0_1, %c0_2] : memref<128x128xf32, #tpu.memory_space<vmem>>, vector<128x128xf32>
    %cst_3 = arith.constant dense<0.000000e+00> : vector<8x128xf32>
    %4 = tpu.matmul %2, %3, %cst_3 {dimension_numbers = #tpu.dot_dimension_numbers<[1], [0], [0], [1], [0, 0, 1, 1], [], []>} : vector<8x128xf32>, vector<128x128xf32>, vector<8x128xf32> -> vector<8x128xf32>
    %5 = tpu.iota {dimensions = array<i32: 1>} : vector<8x128xi32>
    %cst_4 = arith.constant dense<0xFF800000> : vector<8xf32>
    %6 = vector.multi_reduction <maximumf>, %4, %cst_4 [1] : vector<8x128xf32> to vector<8xf32>
    %7 = vector.shape_cast %6 : vector<8xf32> to vector<8x1xf32>
    %8 = vector.broadcast %7 : vector<8x1xf32> to vector<8x128xf32>
    %9 = arith.subf %4, %8 : vector<8x128xf32>
    %10 = math.exp %9 : vector<8x128xf32>
    %c16_i32 = arith.constant 16 : i32
    %11 = vector.broadcast %c16_i32 : i32 to vector<8x128xi32>
    %12 = arith.cmpi slt, %5, %11 : vector<8x128xi32>
    %cst_5 = arith.constant 0.000000e+00 : f32
    %13 = vector.broadcast %cst_5 : f32 to vector<8x128xf32>
    %14 = arith.select %12, %10, %13 : vector<8x128xi1>, vector<8x128xf32>
    %cst_6 = arith.constant dense<0.000000e+00> : vector<8xf32>
    %15 = vector.multi_reduction <add>, %14, %cst_6 [1] : vector<8x128xf32> to vector<8xf32>
    %16 = vector.shape_cast %15 : vector<8xf32> to vector<8x1xf32>
    %c0_7 = arith.constant 0 : index
    %c0_8 = arith.constant 0 : index
    %17 = vector.load %arg3[%c0_7, %c0_8] : memref<8x1xi32, #tpu.memory_space<vmem>>, vector<8x1xi32>
    %18 = vector.broadcast %17 : vector<8x1xi32> to vector<8x128xi32>
    %19 = arith.cmpi eq, %5, %18 : vector<8x128xi32>
    %cst_9 = arith.constant 0.000000e+00 : f32
    %20 = vector.broadcast %cst_9 : f32 to vector<8x128xf32>
    %21 = arith.select %19, %9, %20 : vector<8x128xi1>, vector<8x128xf32>
    %cst_10 = arith.constant dense<0.000000e+00> : vector<8xf32>
    %22 = vector.multi_reduction <add>, %21, %cst_10 [1] : vector<8x128xf32> to vector<8xf32>
    %23 = vector.shape_cast %22 : vector<8xf32> to vector<8x1xf32>
    %24 = math.log %16 : vector<8x1xf32>
    %25 = arith.subf %24, %23 : vector<8x1xf32>
    %c0_11 = arith.constant 0 : index
    %c0_12 = arith.constant 0 : index
    %26 = vector.load %arg4[%c0_11, %c0_12] : memref<8x1xf32, #tpu.memory_space<vmem>>, vector<8x1xf32>
    tpu.vector_store %arg4[%c0_11, %c0_12], %25 {strides = array<i32>} : memref<8x1xf32, #tpu.memory_space<vmem>>, vector<8x1xf32>,
    return
  }
  func.func @transform_0(%arg0: i32) -> (i32, i32) {
    %c0_i32 = arith.constant 0 : i32
    %c0_i32_0 = arith.constant 0 : i32
    return %arg0, %c0_i32 : i32, i32
  }
  func.func @transform_1(%arg0: i32) -> (i32, i32) {
    %c0_i32 = arith.constant 0 : i32
    %c0_i32_0 = arith.constant 0 : i32
    %c0_i32_1 = arith.constant 0 : i32
    return %c0_i32, %c0_i32_0 : i32, i32
  }
  func.func @transform_2(%arg0: i32) -> (i32, i32) {
    %c0_i32 = arith.constant 0 : i32
    %c0_i32_0 = arith.constant 0 : i32
    return %arg0, %c0_i32 : i32, i32
  }
  func.func @transform_3(%arg0: i32) -> (i32, i32) {
    %c0_i32 = arith.constant 0 : i32
    %c0_i32_0 = arith.constant 0 : i32
    return %arg0, %c0_i32 : i32, i32
  }
}

</mosaic_0001>

<llo_original>
// kernel: tpu_custom_call.1
$region0: #{tpu_custom_call.1}
  #allocation0 [shape = 'u32[]', space=smem, size = 0x4, offset = 0x4, fixed_abs, tag = 'smem constant byte address 0x4 - core index']
  #allocation1 [shape = 'u32[144,128]{1,0:T(1,128)}', space=vmem, size = 0x12000, scoped, tag = 'internal scratch']
  %s0 = inlined_call_operand.vmem [shape: f32[8,128], index: 0, kind: input, shape index: {}]
  %s1 = inlined_call_operand.hbm [shape: f32[128,128], index: 1, kind: input, shape index: {}]
  %s2 = inlined_call_operand.vmem [shape: s32[8,1], index: 2, kind: input, shape index: {}]
  %s3 = inlined_call_operand.vmem [shape: f32[8,1], index: 3, kind: output, shape index: {}]
  %s4 = sld [smem:[#allocation0]]
  $region26: #{tpu_custom_call.1} parent=0
    _
  %s6 = ssub.s32 1, %s4
  %s7 = scalar_select 0, %s6, %s4
  $region1: #{tpu_custom_call.1} parent=0
    #allocation2 [shape = 'u8[65536]{0}', space=vmem, size = 0x10000, scoped, tag = 'input window, operand 1, single buffered']
    #allocation3 [shape = 's32[1]{0}', space=sflag, size = 0x4, scoped, tag = 'scoped memory for tpu_custom_call.1']
    %8 = vsyncpa [#allocation3], 0
    // Predicated region
    $region2: #{tpu_custom_call.1} parent=1 // pred_check
      _
    $region3: #{tpu_custom_call.1} parent=1 // pred_check_branch
      %10 = sbr.rel (0) target = $region5
    $region4: #{tpu_custom_call.1} parent=1 // pred_region
      _
    $region5: #{tpu_custom_call.1} parent=1 // pred_fallthru
      _
    // Predicated region
    $region6: #{tpu_custom_call.1} parent=1 // pred_check
      _
    $region7: #{tpu_custom_call.1} parent=1 // pred_check_branch
      %12 = sbr.rel (0) target = $region9
    $region8: #{tpu_custom_call.1} parent=1 // pred_region
      %s14 = ssub.s32 2048, 2048
      %15 = vsyncadd [#allocation3], %s14
      %s16 = sshll.u32 [#allocation2], 4
      %s17 = int_to_ptr.vmem [resolvable:$true] %s16
      %22 = dma.hbm_to_vmem [thread:$0]  %s1, 2048, %s17, [#allocation3], 128, 128, 8
    $region9: #{tpu_custom_call.1} parent=1 // pred_fallthru
      _
    // Predicated region
    $region10: #{tpu_custom_call.1} parent=1 // pred_check
      _
    $region11: #{tpu_custom_call.1} parent=1 // pred_check_branch
      %24 = sbr.rel (0) target = $region13
    $region12: #{tpu_custom_call.1} parent=1 // pred_region
      _
    $region13: #{tpu_custom_call.1} parent=1 // pred_fallthru
      _
    // Predicated region
    $region14: #{tpu_custom_call.1} parent=1 // pred_check
      _
    $region15: #{tpu_custom_call.1} parent=1 // pred_check_branch
      %26 = sbr.rel (0) target = $region17
    $region16: #{tpu_custom_call.1} parent=1 // pred_region
      %27 = dma.done [#allocation3], 2048
    $region17: #{tpu_custom_call.1} parent=1 // pred_fallthru
      _
    %v28 = vld [vmem:[%s0] sm:$0xff]
    %v29 = vmul.f32 %v28, 2.0
    %v30 = vld [vmem:[#allocation2] sm:$0xff]
    %v31 = vld [vmem:[#allocation2 + $0x8] sm:$0xff]
    %v32 = vld [vmem:[#allocation2 + $0x10] sm:$0xff]
    %v33 = vld [vmem:[#allocation2 + $0x18] sm:$0xff]
    %v34 = vld [vmem:[#allocation2 + $0x20] sm:$0xff]
    %v35 = vld [vmem:[#allocation2 + $0x28] sm:$0xff]
    %v36 = vld [vmem:[#allocation2 + $0x30] sm:$0xff]
    %v37 = vld [vmem:[#allocation2 + $0x38] sm:$0xff]
    %v38 = vld [vmem:[#allocation2 + $0x40] sm:$0xff]
    %v39 = vld [vmem:[#allocation2 + $0x48] sm:$0xff]
    %v40 = vld [vmem:[#allocation2 + $0x50] sm:$0xff]
    %v41 = vld [vmem:[#allocation2 + $0x58] sm:$0xff]
    %v42 = vld [vmem:[#allocation2 + $0x60] sm:$0xff]
    %v43 = vld [vmem:[#allocation2 + $0x68] sm:$0xff]
    %v44 = vld [vmem:[#allocation2 + $0x70] sm:$0xff]
    %v45 = vld [vmem:[#allocation2 + $0x78] sm:$0xff]
    %46 = vmatprep.subr.mxu0 0.0
    %47 = vmatpush1.msra.mxu0 %v30
    %48 = vmatprep.subr.mxu0 0.0
    %49 = vmatpush1.msra.mxu0 %v31
    %50 = vmatprep.subr.mxu0 0.0
    %51 = vmatpush1.msra.mxu0 %v32
    %52 = vmatprep.subr.mxu0 0.0
    %53 = vmatpush1.msra.mxu0 %v33
    %54 = vmatprep.subr.mxu0 0.0
    %55 = vmatpush1.msra.mxu0 %v34
    %56 = vmatprep.subr.mxu0 0.0
    %57 = vmatpush1.msra.mxu0 %v35
    %58 = vmatprep.subr.mxu0 0.0
    %59 = vmatpush1.msra.mxu0 %v36
    %60 = vmatprep.subr.mxu0 0.0
    %61 = vmatpush1.msra.mxu0 %v37
    %62 = vmatprep.subr.mxu0 0.0
    %63 = vmatpush1.msra.mxu0 %v38
    %64 = vmatprep.subr.mxu0 0.0
    %65 = vmatpush1.msra.mxu0 %v39
    %66 = vmatprep.subr.mxu0 0.0
    %67 = vmatpush1.msra.mxu0 %v40
    %68 = vmatprep.subr.mxu0 0.0
    %69 = vmatpush1.msra.mxu0 %v41
    %70 = vmatprep.subr.mxu0 0.0
    %71 = vmatpush1.msra.mxu0 %v42
    %72 = vmatprep.subr.mxu0 0.0
    %73 = vmatpush1.msra.mxu0 %v43
    %74 = vmatprep.subr.mxu0 0.0
    %75 = vmatpush1.msra.mxu0 %v44
    %76 = vmatprep.subr.mxu0 0.0
    %77 = vmatpush1.msra.mxu0 %v45
    %78 = vmatprep.subr.mxu0 0.0
    %79 = vmatpush1.msra.mxu0 0.0
    %80 = vmatprep.subr.mxu0 0.0
    %81 = vmatpush1.msra.mxu0 0.0
    %82 = vmatprep.subr.mxu0 0.0
    %83 = vmatpush1.msra.mxu0 0.0
    %84 = vmatprep.subr.mxu0 0.0
    %85 = vmatpush1.msra.mxu0 0.0
    %86 = vmatprep.subr.mxu0 0.0
    %87 = vmatpush1.msra.mxu0 0.0
    %88 = vmatprep.subr.mxu0 0.0
    %89 = vmatpush1.msra.mxu0 0.0
    %90 = vmatprep.subr.mxu0 0.0
    %91 = vmatpush1.msra.mxu0 0.0
    %92 = vmatprep.subr.mxu0 0.0
    %93 = vmatpush1.msra.mxu0 0.0
    %94 = vmatprep.subr.mxu0 0.0
    %95 = vmatpush1.msra.mxu0 0.0
    %96 = vmatprep.subr.mxu0 0.0
    %97 = vmatpush1.msra.mxu0 0.0
    %98 = vmatprep.subr.mxu0 0.0
    %99 = vmatpush1.msra.mxu0 0.0
    %100 = vmatprep.subr.mxu0 0.0
    %101 = vmatpush1.msra.mxu0 0.0
    %102 = vmatprep.subr.mxu0 0.0
    %103 = vmatpush1.msra.mxu0 0.0
    %104 = vmatprep.subr.mxu0 0.0
    %105 = vmatpush1.msra.mxu0 0.0
    %106 = vmatprep.subr.mxu0 0.0
    %107 = vmatpush1.msra.mxu0 0.0
    %108 = vmatprep.subr.mxu0 0.0
    %109 = vmatpush1.msra.mxu0 0.0
    %110 = vmatprep.mubr.f32.mxu0 0.0
    %111 = vmatmul.mubr.f32.gmra.mrb[0].mxu0 %v29
    %v112 = vpop.f32.mrb[0].mxu0
    %v113 = vadd.f32 0.0, %v112
    %v114 = vpop.f32.mrb[0].mxu0
    %115 = vdwg.mxu0
    %v116 = vlaneseq
    %v117 = vand.u32 %v116, 127
    %118 = vmax.xlane.f32.xlu0 %v113
    %v119 = vpop.xlane.xlu0 %118
    %v120 = vsub.f32 %v113, %v119
    %v121 = vmul.f32 %v120, 1.442695
    %v122 = vpow.pop %v121
    %vm123 = vcmp.lt.s32.totalorder %v117, 16
    %v124 = vsel %vm123, %v122, 0.0
    %125 = vadd.xlane.f32.xlu0 %v124
    %v126 = vpop.xlane.xlu0 %125
    %v127 = vld [vmem:[%s2] sm:$0xff]
    %128 = vset.pattern.permute.xlu0 0
    %129 = vperm.xlu0 %128, %v127
    %v130 = vpop.permute.xlu0 %129
    %vm131 = vcmp.eq.s32.totalorder %v117, %v130
    %v132 = vsel %vm131, %v120, 0.0
    %133 = vadd.xlane.f32.xlu0 %v132
    %v134 = vpop.xlane.xlu0 %133
    %v135 = vlog2.pop %v126
    %v136 = vmul.f32 %v135, 0.6931472
    %v137 = vsub.f32 %v136, %v134
    %vm138 = vcmask 7168
    %139 = vst.msk [vmem:[%s3] sm:$0xff] %vm138, %v137
    // Predicated region
    $region18: #{tpu_custom_call.1} parent=1 // pred_check
      _
    $region19: #{tpu_custom_call.1} parent=1 // pred_check_branch
      %141 = sbr.rel (0) target = $region21
    $region20: #{tpu_custom_call.1} parent=1 // pred_region
      _
    $region21: #{tpu_custom_call.1} parent=1 // pred_fallthru
      _
    // Predicated region
    $region22: #{tpu_custom_call.1} parent=1 // pred_check
      _
    $region23: #{tpu_custom_call.1} parent=1 // pred_check_branch
      %143 = sbr.rel (0) target = $region25
    $region24: #{tpu_custom_call.1} parent=1 // pred_region
      _
    $region25: #{tpu_custom_call.1} parent=1 // pred_fallthru
      _
    %144 = vsyncpa [#allocation3], 1

// kernel: tpu_custom_call.1
$region0: #{tpu_custom_call.1}
  #allocation0 [shape = 'u32[]', space=smem, size = 0x4, offset = 0x4, fixed_abs, tag = 'smem constant byte address 0x4 - core index']
  #allocation1 [shape = 'u32[144,128]{1,0:T(1,128)}', space=vmem, size = 0x12000, scoped, tag = 'internal scratch']
  %s0 = inlined_call_operand.vmem [shape: f32[8,128], index: 0, kind: input, shape index: {}]
  %s1 = inlined_call_operand.hbm [shape: f32[128,128], index: 1, kind: input, shape index: {}]
  %s2 = inlined_call_operand.vmem [shape: s32[8,1], index: 2, kind: input, shape index: {}]
  %s3 = inlined_call_operand.vmem [shape: f32[8,1], index: 3, kind: output, shape index: {}]
  %s4 = sld [smem:[#allocation0]]
  $region26: #{tpu_custom_call.1} parent=0
    _
  %s6 = ssub.s32 1, %s4
  %s7 = scalar_select 0, %s6, %s4
  $region1: #{tpu_custom_call.1} parent=0
    #allocation2 [shape = 'u8[65536]{0}', space=vmem, size = 0x10000, scoped, tag = 'input window, operand 1, single buffered']
    #allocation3 [shape = 's32[1]{0}', space=sflag, size = 0x4, scoped, tag = 'scoped memory for tpu_custom_call.1']
    %8 = vsyncpa [#allocation3], 0
    // Predicated region
    $region2: #{tpu_custom_call.1} parent=1 // pred_check
      _
    $region3: #{tpu_custom_call.1} parent=1 // pred_check_branch
      %10 = sbr.rel (0) target = $region5
    $region4: #{tpu_custom_call.1} parent=1 // pred_region
      _
    $region5: #{tpu_custom_call.1} parent=1 // pred_fallthru
      _
    // Predicated region
    $region6: #{tpu_custom_call.1} parent=1 // pred_check
      _
    $region7: #{tpu_custom_call.1} parent=1 // pred_check_branch
      %12 = sbr.rel (0) target = $region9
    $region8: #{tpu_custom_call.1} parent=1 // pred_region
      %s14 = ssub.s32 2048, 2048
      %15 = vsyncadd [#allocation3], %s14
      %s16 = sshll.u32 [#allocation2], 4
      %s17 = int_to_ptr.vmem [resolvable:$true] %s16
      %22 = dma.hbm_to_vmem [thread:$0]  %s1, 2048, %s17, [#allocation3], 128, 128, 8
    $region9: #{tpu_custom_call.1} parent=1 // pred_fallthru
      _
    // Predicated region
    $region10: #{tpu_custom_call.1} parent=1 // pred_check
      _
    $region11: #{tpu_custom_call.1} parent=1 // pred_check_branch
      %24 = sbr.rel (0) target = $region13
    $region12: #{tpu_custom_call.1} parent=1 // pred_region
      _
    $region13: #{tpu_custom_call.1} parent=1 // pred_fallthru
      _
    // Predicated region
    $region14: #{tpu_custom_call.1} parent=1 // pred_check
      _
    $region15: #{tpu_custom_call.1} parent=1 // pred_check_branch
      %26 = sbr.rel (0) target = $region17
    $region16: #{tpu_custom_call.1} parent=1 // pred_region
      %27 = dma.done [#allocation3], 2048
    $region17: #{tpu_custom_call.1} parent=1 // pred_fallthru
      _
    %v28 = vld [vmem:[%s0] sm:$0xff]
    %v29 = vmul.f32 %v28, 2.0
    %v30 = vld [vmem:[#allocation2] sm:$0xff]
    %v31 = vld [vmem:[#allocation2 + $0x8] sm:$0xff]
    %v32 = vld [vmem:[#allocation2 + $0x10] sm:$0xff]
    %v33 = vld [vmem:[#allocation2 + $0x18] sm:$0xff]
    %v34 = vld [vmem:[#allocation2 + $0x20] sm:$0xff]
    %v35 = vld [vmem:[#allocation2 + $0x28] sm:$0xff]
    %v36 = vld [vmem:[#allocation2 + $0x30] sm:$0xff]
    %v37 = vld [vmem:[#allocation2 + $0x38] sm:$0xff]
    %v38 = vld [vmem:[#allocation2 + $0x40] sm:$0xff]
    %v39 = vld [vmem:[#allocation2 + $0x48] sm:$0xff]
    %v40 = vld [vmem:[#allocation2 + $0x50] sm:$0xff]
    %v41 = vld [vmem:[#allocation2 + $0x58] sm:$0xff]
    %v42 = vld [vmem:[#allocation2 + $0x60] sm:$0xff]
    %v43 = vld [vmem:[#allocation2 + $0x68] sm:$0xff]
    %v44 = vld [vmem:[#allocation2 + $0x70] sm:$0xff]
    %v45 = vld [vmem:[#allocation2 + $0x78] sm:$0xff]
    %46 = vmatprep.subr.mxu0 0.0
    %47 = vmatpush1.msra.mxu0 %v30
    %48 = vmatprep.subr.mxu0 0.0
    %49 = vmatpush1.msra.mxu0 %v31
    %50 = vmatprep.subr.mxu0 0.0
    %51 = vmatpush1.msra.mxu0 %v32
    %52 = vmatprep.subr.mxu0 0.0
    %53 = vmatpush1.msra.mxu0 %v33
    %54 = vmatprep.subr.mxu0 0.0
    %55 = vmatpush1.msra.mxu0 %v34
    %56 = vmatprep.subr.mxu0 0.0
    %57 = vmatpush1.msra.mxu0 %v35
    %58 = vmatprep.subr.mxu0 0.0
    %59 = vmatpush1.msra.mxu0 %v36
    %60 = vmatprep.subr.mxu0 0.0
    %61 = vmatpush1.msra.mxu0 %v37
    %62 = vmatprep.subr.mxu0 0.0
    %63 = vmatpush1.msra.mxu0 %v38
    %64 = vmatprep.subr.mxu0 0.0
    %65 = vmatpush1.msra.mxu0 %v39
    %66 = vmatprep.subr.mxu0 0.0
    %67 = vmatpush1.msra.mxu0 %v40
    %68 = vmatprep.subr.mxu0 0.0
    %69 = vmatpush1.msra.mxu0 %v41
    %70 = vmatprep.subr.mxu0 0.0
    %71 = vmatpush1.msra.mxu0 %v42
    %72 = vmatprep.subr.mxu0 0.0
    %73 = vmatpush1.msra.mxu0 %v43
    %74 = vmatprep.subr.mxu0 0.0
    %75 = vmatpush1.msra.mxu0 %v44
    %76 = vmatprep.subr.mxu0 0.0
    %77 = vmatpush1.msra.mxu0 %v45
    %78 = vmatprep.subr.mxu0 0.0
    %79 = vmatpush1.msra.mxu0 0.0
    %80 = vmatprep.subr.mxu0 0.0
    %81 = vmatpush1.msra.mxu0 0.0
    %82 = vmatprep.subr.mxu0 0.0
    %83 = vmatpush1.msra.mxu0 0.0
    %84 = vmatprep.subr.mxu0 0.0
    %85 = vmatpush1.msra.mxu0 0.0
    %86 = vmatprep.subr.mxu0 0.0
    %87 = vmatpush1.msra.mxu0 0.0
    %88 = vmatprep.subr.mxu0 0.0
    %89 = vmatpush1.msra.mxu0 0.0
    %90 = vmatprep.subr.mxu0 0.0
    %91 = vmatpush1.msra.mxu0 0.0
    %92 = vmatprep.subr.mxu0 0.0
    %93 = vmatpush1.msra.mxu0 0.0
    %94 = vmatprep.subr.mxu0 0.0
    %95 = vmatpush1.msra.mxu0 0.0
    %96 = vmatprep.subr.mxu0 0.0
    %97 = vmatpush1.msra.mxu0 0.0
    %98 = vmatprep.subr.mxu0 0.0
    %99 = vmatpush1.msra.mxu0 0.0
    %100 = vmatprep.subr.mxu0 0.0
    %101 = vmatpush1.msra.mxu0 0.0
    %102 = vmatprep.subr.mxu0 0.0
    %103 = vmatpush1.msra.mxu0 0.0
    %104 = vmatprep.subr.mxu0 0.0
    %105 = vmatpush1.msra.mxu0 0.0
    %106 = vmatprep.subr.mxu0 0.0
    %107 = vmatpush1.msra.mxu0 0.0
    %108 = vmatprep.subr.mxu0 0.0
    %109 = vmatpush1.msra.mxu0 0.0
    %110 = vmatprep.mubr.f32.mxu0 0.0
    %111 = vmatmul.mubr.f32.gmra.mrb[0].mxu0 %v29
    %v112 = vpop.f32.mrb[0].mxu0
    %v113 = vadd.f32 0.0, %v112
    %v114 = vpop.f32.mrb[0].mxu0
    %115 = vdwg.mxu0
    %v116 = vlaneseq
    %v117 = vand.u32 %v116, 127
    %118 = vmax.xlane.f32.xlu0 %v113
    %v119 = vpop.xlane.xlu0 %118
    %v120 = vsub.f32 %v113, %v119
    %v121 = vmul.f32 %v120, 1.442695
    %v122 = vpow.pop %v121
    %vm123 = vcmp.lt.s32.totalorder %v117, 16
    %v124 = vsel %vm123, %v122, 0.0
    %125 = vadd.xlane.f32.xlu0 %v124
    %v126 = vpop.xlane.xlu0 %125
    %v127 = vld [vmem:[%s2] sm:$0xff]
    %128 = vset.pattern.permute.xlu0 0
    %129 = vperm.xlu0 %128, %v127
    %v130 = vpop.permute.xlu0 %129
    %vm131 = vcmp.eq.s32.totalorder %v117, %v130
    %v132 = vsel %vm131, %v120, 0.0
    %133 = vadd.xlane.f32.xlu0 %v132
    %v134 = vpop.xlane.xlu0 %133
    %v135 = vlog2.pop %v126
    %v136 = vmul.f32 %v135, 0.6931472
    %v137 = vsub.f32 %v136, %v134
    %vm138 = vcmask 7168
    %139 = vst.msk [vmem:[%s3] sm:$0xff] %vm138, %v137
    // Predicated region
    $region18: #{tpu_custom_call.1} parent=1 // pred_check
      _
    $region19: #{tpu_custom_call.1} parent=1 // pred_check_branch
      %141 = sbr.rel (0) target = $region21
    $region20: #{tpu_custom_call.1} parent=1 // pred_region
      _
    $region21: #{tpu_custom_call.1} parent=1 // pred_fallthru
      _
    // Predicated region
    $region22: #{tpu_custom_call.1} parent=1 // pred_check
      _
    $region23: #{tpu_custom_call.1} parent=1 // pred_check_branch
      %143 = sbr.rel (0) target = $region25
    $region24: #{tpu_custom_call.1} parent=1 // pred_region
      _
    $region25: #{tpu_custom_call.1} parent=1 // pred_fallthru
      _
    %144 = vsyncpa [#allocation3], 1

</llo_original>
